<compile_context>
chip_gen: v5e
topology: v5e:2x2
jax: 0.10.0
libtpu: 0.0.40
codegen_flags: <defaults>
</compile_context>

<pallas_src>
import jax
import jax.numpy as jnp
from jax.experimental import pallas as pl
from jax.experimental.pallas import tpu as pltpu

_LANES = 128          # lane-dense minor dimension
_MAX_BLOCK_ROWS = 1024  # f32 rows per grid step; sized against v7x scoped VMEM


def _elementwise_kernel(a_ref, b_ref, o_ref):
    # a_ref/b_ref: (block_rows, 128) f32 in VMEM
    # o_ref      : (7, block_rows, 128) f32
    #   [0]=add [1]=sub [2]=mul [3]=div [4]=gt [5]=lt [6]=eq (masks as 0.0/1.0)
    a = a_ref[...]
    b = b_ref[...]

    one = jnp.float32(1.0)
    zero = jnp.float32(0.0)

    o_ref[0] = a + b
    o_ref[1] = a - b
    o_ref[2] = a * b
    o_ref[3] = a / (b + 1e-08)
    o_ref[4] = jnp.where(a > b, one, zero)
    o_ref[5] = jnp.where(a < b, one, zero)
    o_ref[6] = jnp.where(a == b, one, zero)


@jax.jit
def pt_module_forward(x0, x1):
    assert x0.shape == x1.shape and x0.dtype == x1.dtype
    shape = x0.shape
    fdt = x0.dtype

    n = x0.size
    assert n % _LANES == 0, "total element count must be a multiple of 128"
    rows = n // _LANES

    # Lane-dense 2D view: (2,4,16,16) -> (16,128). Pure layout plumbing, fused by jit.
    a2 = x0.reshape(rows, _LANES)
    b2 = x1.reshape(rows, _LANES)

    block_rows = min(rows, _MAX_BLOCK_ROWS)
    grid = (pl.cdiv(rows, block_rows),)

    out = pl.pallas_call(
        _elementwise_kernel,
        out_shape=jax.ShapeDtypeStruct((7, rows, _LANES), fdt),
        grid_spec=pltpu.PrefetchScalarGridSpec(
            num_scalar_prefetch=0,
            grid=grid,
            in_specs=[
                pl.BlockSpec((block_rows, _LANES), lambda i: (i, 0)),
                pl.BlockSpec((block_rows, _LANES), lambda i: (i, 0)),
            ],
            out_specs=pl.BlockSpec((7, block_rows, _LANES), lambda i: (0, i, 0)),
        ),
        compiler_params=pltpu.CompilerParams(
            dimension_semantics=("parallel",)),
    )(a2, b2)

    # Split / reshape back to NCHW and cast masks to bool (fused by jit).
    return {
        'addition':       out[0].reshape(shape),
        'subtraction':    out[1].reshape(shape),
        'multiplication': out[2].reshape(shape),
        'division':       out[3].reshape(shape),
        'greater_than':   (out[4].reshape(shape) != 0),
        'less_than':      (out[5].reshape(shape) != 0),
        'equal_to':       (out[6].reshape(shape) != 0),
    }


if __name__ == "__main__":
    key = jax.random.PRNGKey(0)
    k0, k1 = jax.random.split(key)
    shape = (2, 4, 16, 16)
    x0 = jax.random.normal(k0, shape, dtype=jnp.float32)
    x1 = jax.random.normal(k1, shape, dtype=jnp.float32)
    # Inject some exact equalities so 'equal_to' is non-trivial.
    x1 = x1.at[0, 0, :4, :4].set(x0[0, 0, :4, :4])

    results = pt_module_forward(x0, x1)
    jax.block_until_ready(results)

    # Reference check in plain JAX (mirrors the PyTorch module's formulas).
    ref = {
        'addition': x0 + x1,
        'subtraction': x0 - x1,
        'multiplication': x0 * x1,
        'division': x0 / (x1 + 1e-08),
        'greater_than': x0 > x1,
        'less_than': x0 < x1,
        'equal_to': x0 == x1,
    }
    for name, val in ref.items():
        got = results[name]
        assert got.shape == val.shape, (name, got.shape, val.shape)
        assert got.dtype == val.dtype, (name, got.dtype, val.dtype)
        if got.dtype == jnp.bool_:
            assert bool(jnp.all(got == val)), name
        else:
            assert bool(jnp.allclose(got, val, rtol=1e-6, atol=1e-6)), name

    print("KERNEL_OK")
</pallas_src>

<mosaic_0001>
module attributes {stable_mosaic.version = 11 : i64} {
  func.func @_elementwise_kernel(%arg0: i32, %arg1: memref<16x128xf32, #tpu.memory_space<vmem>>, %arg2: memref<16x128xf32, #tpu.memory_space<vmem>>, %arg3: memref<7x16x128xf32, #tpu.memory_space<vmem>>) attributes {dimension_semantics = [#tpu.dimension_semantics<parallel>], iteration_bounds = array<i64: 1>, scalar_prefetch = 0 : i64, scratch_operands = 0 : i64, tpu.core_type = #tpu.core_type<tc>, window_params = [{transform_indices = @transform_0, window_bounds = array<i64: 16, 128>}, {transform_indices = @transform_1, window_bounds = array<i64: 16, 128>}, {transform_indices = @transform_2, window_bounds = array<i64: 7, 16, 128>}]} {
    %c0 = arith.constant 0 : index
    %c0_0 = arith.constant 0 : index
    %0 = vector.load %arg1[%c0, %c0_0] : memref<16x128xf32, #tpu.memory_space<vmem>>, vector<16x128xf32>
    %c0_1 = arith.constant 0 : index
    %c0_2 = arith.constant 0 : index
    %1 = vector.load %arg2[%c0_1, %c0_2] : memref<16x128xf32, #tpu.memory_space<vmem>>, vector<16x128xf32>
    %2 = arith.addf %0, %1 : vector<16x128xf32>
    %c0_3 = arith.constant 0 : index
    %c0_4 = arith.constant 0 : index
    %c0_5 = arith.constant 0 : index
    %3 = vector.load %arg3[%c0_3, %c0_4, %c0_5] : memref<7x16x128xf32, #tpu.memory_space<vmem>>, vector<1x16x128xf32>
    %4 = vector.shape_cast %3 : vector<1x16x128xf32> to vector<16x128xf32>
    %5 = vector.shape_cast %2 : vector<16x128xf32> to vector<1x16x128xf32>
    tpu.vector_store %arg3[%c0_3, %c0_4, %c0_5], %5 {strides = array<i32>} : memref<7x16x128xf32, #tpu.memory_space<vmem>>, vector<1x16x128xf32>,
    %6 = arith.subf %0, %1 : vector<16x128xf32>
    %c1 = arith.constant 1 : index
    %c0_6 = arith.constant 0 : index
    %c0_7 = arith.constant 0 : index
    %7 = vector.load %arg3[%c1, %c0_6, %c0_7] : memref<7x16x128xf32, #tpu.memory_space<vmem>>, vector<1x16x128xf32>
    %8 = vector.shape_cast %7 : vector<1x16x128xf32> to vector<16x128xf32>
    %9 = vector.shape_cast %6 : vector<16x128xf32> to vector<1x16x128xf32>
    tpu.vector_store %arg3[%c1, %c0_6, %c0_7], %9 {strides = array<i32>} : memref<7x16x128xf32, #tpu.memory_space<vmem>>, vector<1x16x128xf32>,
    %10 = arith.mulf %0, %1 : vector<16x128xf32>
    %c2 = arith.constant 2 : index
    %c0_8 = arith.constant 0 : index
    %c0_9 = arith.constant 0 : index
    %11 = vector.load %arg3[%c2, %c0_8, %c0_9] : memref<7x16x128xf32, #tpu.memory_space<vmem>>, vector<1x16x128xf32>
    %12 = vector.shape_cast %11 : vector<1x16x128xf32> to vector<16x128xf32>
    %13 = vector.shape_cast %10 : vector<16x128xf32> to vector<1x16x128xf32>
    tpu.vector_store %arg3[%c2, %c0_8, %c0_9], %13 {strides = array<i32>} : memref<7x16x128xf32, #tpu.memory_space<vmem>>, vector<1x16x128xf32>,
    %cst = arith.constant 9.99999993E-9 : f32
    %14 = vector.broadcast %cst : f32 to vector<16x128xf32>
    %15 = arith.addf %1, %14 : vector<16x128xf32>
    %16 = arith.divf %0, %15 : vector<16x128xf32>
    %c3 = arith.constant 3 : index
    %c0_10 = arith.constant 0 : index
    %c0_11 = arith.constant 0 : index
    %17 = vector.load %arg3[%c3, %c0_10, %c0_11] : memref<7x16x128xf32, #tpu.memory_space<vmem>>, vector<1x16x128xf32>
    %18 = vector.shape_cast %17 : vector<1x16x128xf32> to vector<16x128xf32>
    %19 = vector.shape_cast %16 : vector<16x128xf32> to vector<1x16x128xf32>
    tpu.vector_store %arg3[%c3, %c0_10, %c0_11], %19 {strides = array<i32>} : memref<7x16x128xf32, #tpu.memory_space<vmem>>, vector<1x16x128xf32>,
    %20 = arith.cmpf ogt, %0, %1 : vector<16x128xf32>
    %cst_12 = arith.constant 1.000000e+00 : f32
    %cst_13 = arith.constant 0.000000e+00 : f32
    %21 = vector.broadcast %cst_12 : f32 to vector<16x128xf32>
    %22 = vector.broadcast %cst_13 : f32 to vector<16x128xf32>
    %23 = arith.select %20, %21, %22 : vector<16x128xi1>, vector<16x128xf32>
    %c4 = arith.constant 4 : index
    %c0_14 = arith.constant 0 : index
    %c0_15 = arith.constant 0 : index
    %24 = vector.load %arg3[%c4, %c0_14, %c0_15] : memref<7x16x128xf32, #tpu.memory_space<vmem>>, vector<1x16x128xf32>
    %25 = vector.shape_cast %24 : vector<1x16x128xf32> to vector<16x128xf32>
    %26 = vector.shape_cast %23 : vector<16x128xf32> to vector<1x16x128xf32>
    tpu.vector_store %arg3[%c4, %c0_14, %c0_15], %26 {strides = array<i32>} : memref<7x16x128xf32, #tpu.memory_space<vmem>>, vector<1x16x128xf32>,
    %27 = arith.cmpf olt, %0, %1 : vector<16x128xf32>
    %cst_16 = arith.constant 1.000000e+00 : f32
    %cst_17 = arith.constant 0.000000e+00 : f32
    %28 = vector.broadcast %cst_16 : f32 to vector<16x128xf32>
    %29 = vector.broadcast %cst_17 : f32 to vector<16x128xf32>
    %30 = arith.select %27, %28, %29 : vector<16x128xi1>, vector<16x128xf32>
    %c5 = arith.constant 5 : index
    %c0_18 = arith.constant 0 : index
    %c0_19 = arith.constant 0 : index
    %31 = vector.load %arg3[%c5, %c0_18, %c0_19] : memref<7x16x128xf32, #tpu.memory_space<vmem>>, vector<1x16x128xf32>
    %32 = vector.shape_cast %31 : vector<1x16x128xf32> to vector<16x128xf32>
    %33 = vector.shape_cast %30 : vector<16x128xf32> to vector<1x16x128xf32>
    tpu.vector_store %arg3[%c5, %c0_18, %c0_19], %33 {strides = array<i32>} : memref<7x16x128xf32, #tpu.memory_space<vmem>>, vector<1x16x128xf32>,
    %34 = arith.cmpf oeq, %0, %1 : vector<16x128xf32>
    %cst_20 = arith.constant 1.000000e+00 : f32
    %cst_21 = arith.constant 0.000000e+00 : f32
    %35 = vector.broadcast %cst_20 : f32 to vector<16x128xf32>
    %36 = vector.broadcast %cst_21 : f32 to vector<16x128xf32>
    %37 = arith.select %34, %35, %36 : vector<16x128xi1>, vector<16x128xf32>
    %c6 = arith.constant 6 : index
    %c0_22 = arith.constant 0 : index
    %c0_23 = arith.constant 0 : index
    %38 = vector.load %arg3[%c6, %c0_22, %c0_23] : memref<7x16x128xf32, #tpu.memory_space<vmem>>, vector<1x16x128xf32>
    %39 = vector.shape_cast %38 : vector<1x16x128xf32> to vector<16x128xf32>
    %40 = vector.shape_cast %37 : vector<16x128xf32> to vector<1x16x128xf32>
    tpu.vector_store %arg3[%c6, %c0_22, %c0_23], %40 {strides = array<i32>} : memref<7x16x128xf32, #tpu.memory_space<vmem>>, vector<1x16x128xf32>,
    return
  }
  func.func @transform_0(%arg0: i32) -> (i32, i32) {
    %c0_i32 = arith.constant 0 : i32
    %c0_i32_0 = arith.constant 0 : i32
    return %arg0, %c0_i32 : i32, i32
  }
  func.func @transform_1(%arg0: i32) -> (i32, i32) {
    %c0_i32 = arith.constant 0 : i32
    %c0_i32_0 = arith.constant 0 : i32
    return %arg0, %c0_i32 : i32, i32
  }
  func.func @transform_2(%arg0: i32) -> (i32, i32, i32) {
    %c0_i32 = arith.constant 0 : i32
    %c0_i32_0 = arith.constant 0 : i32
    %c0_i32_1 = arith.constant 0 : i32
    return %c0_i32, %arg0, %c0_i32_0 : i32, i32, i32
  }
}

</mosaic_0001>

<llo_original>
// kernel: squeeze.8
$region0: #{squeeze.8}
  %s0 = inlined_call_operand.vmem [shape: f32[1,16,128], index: 0, kind: input, shape index: {}]
  %s1 = inlined_call_operand.hbm [shape: f32[2,4,16,16], index: 1, kind: output, shape index: {}]
  $region1: #{squeeze.8} parent=0
    #allocation0 [shape = 'u8[65536]{0}', space=vmem, size = 0x10000, scoped, tag = 'operand span for operand 1']
    #allocation1 [shape = 's32[1]{0}', space=sflag, size = 0x4, scoped, tag = 'scoped memory for squeeze.8']
    %2 = vsyncpa [#allocation1], 0
    %v3 = vld [vmem:[%s0] sm:$0xff]
    %vm4 = vcmask 130048
    %5 = vst.msk [vmem:[#allocation0] ss:$8 sm:$0xf] %vm4, %v3
    %6 = vst.msk [vmem:[#allocation0] ss:$8 sm:$0xf0] %vm4, %v3
    %s7 = scalar_lea.vmem %s0, 8
    %v8 = vld [vmem:[%s7] sm:$0xff]
    %vm9 = vcmask 130048
    %s10 = scalar_lea.vmem [#allocation0], 64
    %11 = vst.msk [vmem:[%s10] ss:$8 sm:$0xf] %vm9, %v8
    %s12 = scalar_lea.vmem [#allocation0], 64
    %13 = vst.msk [vmem:[%s12] ss:$8 sm:$0xf0] %vm9, %v8
    %v14 = vld [vmem:[%s0] sm:$0xff]
    %15 = vrot.lane.b32.xlu0 %v14, 112
    %v16 = vpop.permute.xlu0 %15
    %vm17 = vcmask 130048
    %s18 = scalar_lea.vmem [#allocation0], 1
    %19 = vst.msk [vmem:[%s18] ss:$8 sm:$0xf] %vm17, %v16
    %s20 = scalar_lea.vmem [#allocation0], 1
    %21 = vst.msk [vmem:[%s20] ss:$8 sm:$0xf0] %vm17, %v16
    %s22 = scalar_lea.vmem %s0, 8
    %v23 = vld [vmem:[%s22] sm:$0xff]
    %24 = vrot.lane.b32.xlu0 %v23, 112
    %v25 = vpop.permute.xlu0 %24
    %vm26 = vcmask 130048
    %s27 = scalar_lea.vmem [#allocation0], 65
    %28 = vst.msk [vmem:[%s27] ss:$8 sm:$0xf] %vm26, %v25
    %s29 = scalar_lea.vmem [#allocation0], 65
    %30 = vst.msk [vmem:[%s29] ss:$8 sm:$0xf0] %vm26, %v25
    %v31 = vld [vmem:[%s0] sm:$0xff]
    %32 = vrot.lane.b32.xlu0 %v31, 96
    %v33 = vpop.permute.xlu0 %32
    %vm34 = vcmask 130048
    %s35 = scalar_lea.vmem [#allocation0], 2
    %36 = vst.msk [vmem:[%s35] ss:$8 sm:$0xf] %vm34, %v33
    %s37 = scalar_lea.vmem [#allocation0], 2
    %38 = vst.msk [vmem:[%s37] ss:$8 sm:$0xf0] %vm34, %v33
    %s39 = scalar_lea.vmem %s0, 8
    %v40 = vld [vmem:[%s39] sm:$0xff]
    %41 = vrot.lane.b32.xlu0 %v40, 96
    %v42 = vpop.permute.xlu0 %41
    %vm43 = vcmask 130048
    %s44 = scalar_lea.vmem [#allocation0], 66
    %45 = vst.msk [vmem:[%s44] ss:$8 sm:$0xf] %vm43, %v42
    %s46 = scalar_lea.vmem [#allocation0], 66
    %47 = vst.msk [vmem:[%s46] ss:$8 sm:$0xf0] %vm43, %v42
    %v48 = vld [vmem:[%s0] sm:$0xff]
    %49 = vrot.lane.b32.xlu0 %v48, 80
    %v50 = vpop.permute.xlu0 %49
    %vm51 = vcmask 130048
    %s52 = scalar_lea.vmem [#allocation0], 3
    %53 = vst.msk [vmem:[%s52] ss:$8 sm:$0xf] %vm51, %v50
    %s54 = scalar_lea.vmem [#allocation0], 3
    %55 = vst.msk [vmem:[%s54] ss:$8 sm:$0xf0] %vm51, %v50
    %s56 = scalar_lea.vmem %s0, 8
    %v57 = vld [vmem:[%s56] sm:$0xff]
    %58 = vrot.lane.b32.xlu0 %v57, 80
    %v59 = vpop.permute.xlu0 %58
    %vm60 = vcmask 130048
    %s61 = scalar_lea.vmem [#allocation0], 67
    %62 = vst.msk [vmem:[%s61] ss:$8 sm:$0xf] %vm60, %v59
    %s63 = scalar_lea.vmem [#allocation0], 67
    %64 = vst.msk [vmem:[%s63] ss:$8 sm:$0xf0] %vm60, %v59
    %v65 = vld [vmem:[%s0] sm:$0xff]
    %66 = vrot.lane.b32.xlu0 %v65, 64
    %v67 = vpop.permute.xlu0 %66
    %vm68 = vcmask 130048
    %s69 = scalar_lea.vmem [#allocation0], 4
    %70 = vst.msk [vmem:[%s69] ss:$8 sm:$0xf] %vm68, %v67
    %s71 = scalar_lea.vmem [#allocation0], 4
    %72 = vst.msk [vmem:[%s71] ss:$8 sm:$0xf0] %vm68, %v67
    %s73 = scalar_lea.vmem %s0, 8
    %v74 = vld [vmem:[%s73] sm:$0xff]
    %75 = vrot.lane.b32.xlu0 %v74, 64
    %v76 = vpop.permute.xlu0 %75
    %vm77 = vcmask 130048
    %s78 = scalar_lea.vmem [#allocation0], 68
    %79 = vst.msk [vmem:[%s78] ss:$8 sm:$0xf] %vm77, %v76
    %s80 = scalar_lea.vmem [#allocation0], 68
    %81 = vst.msk [vmem:[%s80] ss:$8 sm:$0xf0] %vm77, %v76
    %v82 = vld [vmem:[%s0] sm:$0xff]
    %83 = vrot.lane.b32.xlu0 %v82, 48
    %v84 = vpop.permute.xlu0 %83
    %vm85 = vcmask 130048
    %s86 = scalar_lea.vmem [#allocation0], 5
    %87 = vst.msk [vmem:[%s86] ss:$8 sm:$0xf] %vm85, %v84
    %s88 = scalar_lea.vmem [#allocation0], 5
    %89 = vst.msk [vmem:[%s88] ss:$8 sm:$0xf0] %vm85, %v84
    %s90 = scalar_lea.vmem %s0, 8
    %v91 = vld [vmem:[%s90] sm:$0xff]
    %92 = vrot.lane.b32.xlu0 %v91, 48
    %v93 = vpop.permute.xlu0 %92
    %vm94 = vcmask 130048
    %s95 = scalar_lea.vmem [#allocation0], 69
    %96 = vst.msk [vmem:[%s95] ss:$8 sm:$0xf] %vm94, %v93
    %s97 = scalar_lea.vmem [#allocation0], 69
    %98 = vst.msk [vmem:[%s97] ss:$8 sm:$0xf0] %vm94, %v93
    %v99 = vld [vmem:[%s0] sm:$0xff]
    %100 = vrot.lane.b32.xlu0 %v99, 32
    %v101 = vpop.permute.xlu0 %100
    %vm102 = vcmask 130048
    %s103 = scalar_lea.vmem [#allocation0], 6
    %104 = vst.msk [vmem:[%s103] ss:$8 sm:$0xf] %vm102, %v101
    %s105 = scalar_lea.vmem [#allocation0], 6
    %106 = vst.msk [vmem:[%s105] ss:$8 sm:$0xf0] %vm102, %v101
    %s107 = scalar_lea.vmem %s0, 8
    %v108 = vld [vmem:[%s107] sm:$0xff]
    %109 = vrot.lane.b32.xlu0 %v108, 32
    %v110 = vpop.permute.xlu0 %109
    %vm111 = vcmask 130048
    %s112 = scalar_lea.vmem [#allocation0], 70
    %113 = vst.msk [vmem:[%s112] ss:$8 sm:$0xf] %vm111, %v110
    %s114 = scalar_lea.vmem [#allocation0], 70
    %115 = vst.msk [vmem:[%s114] ss:$8 sm:$0xf0] %vm111, %v110
    %v116 = vld [vmem:[%s0] sm:$0xff]
    %117 = vrot.lane.b32.xlu0 %v116, 16
    %v118 = vpop.permute.xlu0 %117
    %vm119 = vcmask 130048
    %s120 = scalar_lea.vmem [#allocation0], 7
    %121 = vst.msk [vmem:[%s120] ss:$8 sm:$0xf] %vm119, %v118
    %s122 = scalar_lea.vmem [#allocation0], 7
    %123 = vst.msk [vmem:[%s122] ss:$8 sm:$0xf0] %vm119, %v118
    %s124 = scalar_lea.vmem %s0, 8
    %v125 = vld [vmem:[%s124] sm:$0xff]
    %126 = vrot.lane.b32.xlu0 %v125, 16
    %v127 = vpop.permute.xlu0 %126
    %vm128 = vcmask 130048
    %s129 = scalar_lea.vmem [#allocation0], 71
    %130 = vst.msk [vmem:[%s129] ss:$8 sm:$0xf] %vm128, %v127
    %s131 = scalar_lea.vmem [#allocation0], 71
    %132 = vst.msk [vmem:[%s131] ss:$8 sm:$0xf0] %vm128, %v127
    %134 = vsyncadd [#allocation1], 0
    %s136 = sshll.u32 [#allocation0], 4
    %s137 = int_to_ptr.vmem [resolvable:$true] %s136
    %s138 = sshll.u32 %s1, 4
    %s139 = int_to_ptr.hbm [resolvable:$true] %s138
    %141 = dma.vmem_to_hbm [thread:$0]  %s137, 2048, %s139, [#allocation1]
    %143 = dma.done [#allocation1], 2048
    %144 = vsyncpa [#allocation1], 1

// kernel: pt_module_forward.1
$region0: #{pt_module_forward.1}
  #allocation0 [shape = 'u32[]', space=smem, size = 0x4, offset = 0x4, fixed_abs, tag = 'smem constant byte address 0x4 - core index']
  #allocation1 [shape = 'u32[72,128]{1,0:T(1,128)}', space=vmem, size = 0x9000, scoped, tag = 'internal scratch']
  %s0 = inlined_call_operand.vmem [shape: f32[16,128], index: 0, kind: input, shape index: {}]
  %s1 = inlined_call_operand.vmem [shape: f32[16,128], index: 1, kind: input, shape index: {}]
  %s2 = inlined_call_operand.vmem [shape: f32[7,16,128], index: 2, kind: output, shape index: {}]
  %s3 = sld [smem:[#allocation0]]
  $region18: #{pt_module_forward.1} parent=0
    _
  %s5 = ssub.s32 1, %s3
  %s6 = scalar_select 0, %s5, %s3
  // Predicated region
  $region2: #{pt_module_forward.1} parent=0 // pred_check
    _
  $region3: #{pt_module_forward.1} parent=0 // pred_check_branch
    %8 = sbr.rel (0) target = $region5
  $region4: #{pt_module_forward.1} parent=0 // pred_region
    _
  $region5: #{pt_module_forward.1} parent=0 // pred_fallthru
    _
  // Predicated region
  $region6: #{pt_module_forward.1} parent=0 // pred_check
    _
  $region7: #{pt_module_forward.1} parent=0 // pred_check_branch
    %10 = sbr.rel (0) target = $region9
  $region8: #{pt_module_forward.1} parent=0 // pred_region
    _
  $region9: #{pt_module_forward.1} parent=0 // pred_fallthru
    _
  %v11 = vld [vmem:[%s0] sm:$0xff]
  %v12 = vld [vmem:[%s0 + $0x8] sm:$0xff]
  %v13 = vld [vmem:[%s1] sm:$0xff]
  %v14 = vld [vmem:[%s1 + $0x8] sm:$0xff]
  %v15 = vadd.f32 %v11, %v13
  %v16 = vadd.f32 %v12, %v14
  %17 = vst [vmem:[%s2] sm:$0xff] %v15
  %18 = vst [vmem:[%s2 + $0x8] sm:$0xff] %v16
  %v19 = vsub.f32 %v11, %v13
  %v20 = vsub.f32 %v12, %v14
  %s21 = scalar_lea.vmem %s2, 16
  %22 = vst [vmem:[%s21] sm:$0xff] %v19
  %23 = vst [vmem:[%s21 + $0x8] sm:$0xff] %v20
  %v24 = vmul.f32 %v11, %v13
  %v25 = vmul.f32 %v12, %v14
  %s26 = scalar_lea.vmem %s2, 32
  %27 = vst [vmem:[%s26] sm:$0xff] %v24
  %28 = vst [vmem:[%s26 + $0x8] sm:$0xff] %v25
  %v29 = vadd.f32 %v13, 1e-08
  %v30 = vadd.f32 %v14, 1e-08
  %v31 = vrcp.pop %v29
  %v32 = vmul.f32 %v29, %v31
  %v33 = vsub.f32 1.0, %v32
  %v34 = vmul.f32 %v31, %v33
  %v35 = vadd.f32 %v31, %v34
  %vm36 = vweird.f32 %v29
  %vm37 = vweird.f32 %v31
  %vm38 = vmor %vm36, %vm37
  %v39 = vsel %vm38, %v31, %v35
  %v40 = vand.u32 2147483647, %v29
  %vm41 = vcmp.eq.f32.partialorder %v40, 8.507059e+37
  %v42 = vand.u32 %v29, 2147483648
  %v43 = vor.u32 1.1754944e-38, %v42
  %v44 = vsel %vm41, %v43, %v39
  %v45 = vmul.f32 %v11, %v44
  %v46 = vrcp.pop %v30
  %v47 = vmul.f32 %v30, %v46
  %v48 = vsub.f32 1.0, %v47
  %v49 = vmul.f32 %v46, %v48
  %v50 = vadd.f32 %v46, %v49
  %vm51 = vweird.f32 %v30
  %vm52 = vweird.f32 %v46
  %vm53 = vmor %vm51, %vm52
  %v54 = vsel %vm53, %v46, %v50
  %v55 = vand.u32 2147483647, %v30
  %vm56 = vcmp.eq.f32.partialorder %v55, 8.507059e+37
  %v57 = vand.u32 %v30, 2147483648
  %v58 = vor.u32 1.1754944e-38, %v57
  %v59 = vsel %vm56, %v58, %v54
  %v60 = vmul.f32 %v12, %v59
  %s61 = scalar_lea.vmem %s2, 48
  %62 = vst [vmem:[%s61] sm:$0xff] %v45
  %63 = vst [vmem:[%s61 + $0x8] sm:$0xff] %v60
  %vm64 = vcmp.gt.f32.partialorder %v11, %v13
  %vm65 = vcmp.gt.f32.partialorder %v12, %v14
  %v66 = vsel %vm64, 1.0, 0.0
  %v67 = vsel %vm65, 1.0, 0.0
  %s68 = scalar_lea.vmem %s2, 64
  %69 = vst [vmem:[%s68] sm:$0xff] %v66
  %70 = vst [vmem:[%s68 + $0x8] sm:$0xff] %v67
  %vm71 = vcmp.lt.f32.partialorder %v11, %v13
  %vm72 = vcmp.lt.f32.partialorder %v12, %v14
  %v73 = vsel %vm71, 1.0, 0.0
  %v74 = vsel %vm72, 1.0, 0.0
  %s75 = scalar_lea.vmem %s2, 80
  %76 = vst [vmem:[%s75] sm:$0xff] %v73
  %77 = vst [vmem:[%s75 + $0x8] sm:$0xff] %v74
  %vm78 = vcmp.eq.f32.partialorder %v11, %v13
  %vm79 = vcmp.eq.f32.partialorder %v12, %v14
  %v80 = vsel %vm78, 1.0, 0.0
  %v81 = vsel %vm79, 1.0, 0.0
  %s82 = scalar_lea.vmem %s2, 96
  %83 = vst [vmem:[%s82] sm:$0xff] %v80
  %84 = vst [vmem:[%s82 + $0x8] sm:$0xff] %v81
  // Predicated region
  $region10: #{pt_module_forward.1} parent=0 // pred_check
    _
  $region11: #{pt_module_forward.1} parent=0 // pred_check_branch
    %86 = sbr.rel (0) target = $region13
  $region12: #{pt_module_forward.1} parent=0 // pred_region
    _
  $region13: #{pt_module_forward.1} parent=0 // pred_fallthru
    _
  // Predicated region
  $region14: #{pt_module_forward.1} parent=0 // pred_check
    _
  $region15: #{pt_module_forward.1} parent=0 // pred_check_branch
    %88 = sbr.rel (0) target = $region17
  $region16: #{pt_module_forward.1} parent=0 // pred_region
    _
  $region17: #{pt_module_forward.1} parent=0 // pred_fallthru
    _

</llo_original>
